<compile_context>
chip_gen: v7x
topology: tpu7x:2x2x1
jax: 0.10.0
libtpu: 0.0.40
codegen_flags: <defaults>
</compile_context>

<pallas_src>
import functools

import jax
import jax.numpy as jnp
from jax.experimental import pallas as pl
from jax.experimental.pallas import tpu as pltpu


def _prob_of_class1(x):
    """softmax(x, -1)[..., 1:2] with a 2-class sigmoid fast path. x: [Bb, N, C] f32."""
    C = x.shape[-1]
    if C == 2:
        # exact: softmax[...,1] = sigmoid(x1 - x0); exp runs on the EUP slot.
        return 1.0 / (1.0 + jnp.exp(x[..., 0:1] - x[..., 1:2]))
    m = jnp.max(x, axis=-1, keepdims=True)
    e = jnp.exp(x - m)
    return e[..., 1:2] * pl.reciprocal(jnp.sum(e, axis=-1, keepdims=True), approx=True)


def _matcher_cost_kernel(cost_node_w, cost_class_w,
                         nodes_ref, tgt_t_ref, logits_ref, rels_ref,
                         unary_ref, quad_ref):
    # Blocks carry a leading batch-block dim Bb.
    nodes = nodes_ref[...].astype(jnp.float32)      # [Bb, Q, 4]  (xyz sliced below)
    tgt_t = tgt_t_ref[...].astype(jnp.float32)      # [Bb, 3, T]  (pre-transposed)

    # Pairwise L2 distance, K=3 contraction unrolled on the VPU:
    #   d2 = sum_k (a[:, :, k] - b[:, k, :])^2   -> no MXU push/pop, no XLU reduce,
    #   and no a^2+b^2-2ab cancellation.
    d2 = None
    for k in range(3):
        diff = nodes[:, :, k:k + 1] - tgt_t[:, k:k + 1, :]        # [Bb, Q, T]
        sq = diff * diff
        d2 = sq if d2 is None else d2 + sq
    # (forward-only cost; add an eps inside sqrt if a VJP is ever attached)
    dist = jnp.sqrt(d2)                                           # [Bb, Q, T]

    # Class cost: -softmax(pred_logits)[:, 1], identical across target columns.
    p1 = _prob_of_class1(logits_ref[...].astype(jnp.float32))     # [Bb, Q, 1]
    unary_ref[...] = cost_node_w * dist - cost_class_w * p1       # broadcast -> [Bb, Q, T]

    # Quadratic cost is rank-1 over target edges: emit the [R, 1] column only.
    q1 = _prob_of_class1(rels_ref[...].astype(jnp.float32))       # [Bb, R, 1]
    quad_ref[...] = -q1


def graph_matcher_costs(pred_nodes, pred_logits, pred_rels_score, tgt_nodes,
                        n_tgt_edges, cost_node_w, cost_class_w):
    B, Q, F = pred_nodes.shape
    T = tgt_nodes.shape[1]
    R, C_rel = pred_rels_score.shape[1], pred_rels_score.shape[2]
    C_cls = pred_logits.shape[2]
    assert F >= 3, "pred_nodes must carry at least xyz"
    assert C_cls >= 2 and C_rel >= 2, "target ids are hard-coded to class 1"

    # Fold batch into the block, but keep >=2 grid steps when possible so both
    # v7x TensorCores get work (grid is sharded via dimension_semantics).
    if B >= 2 and B % 2 == 0:
        Bb = B // 2
    else:
        Bb = 1
    grid = (B // Bb,)

    # One cheap XLA transpose so the kernel can broadcast rows of tgt along lanes.
    tgt_t = jnp.swapaxes(tgt_nodes, 1, 2)                          # [B, 3, T]

    kernel = functools.partial(
        _matcher_cost_kernel, float(cost_node_w), float(cost_class_w))

    unary, quad_col = pl.pallas_call(
        kernel,
        out_shape=(jax.ShapeDtypeStruct((B, Q, T), jnp.float32),
                   jax.ShapeDtypeStruct((B, R, 1), jnp.float32)),
        grid_spec=pltpu.PrefetchScalarGridSpec(
            num_scalar_prefetch=0,
            grid=grid,
            in_specs=[
                pl.BlockSpec((Bb, Q, F), lambda b: (b, 0, 0)),
                pl.BlockSpec((Bb, 3, T), lambda b: (b, 0, 0)),
                pl.BlockSpec((Bb, Q, C_cls), lambda b: (b, 0, 0)),
                pl.BlockSpec((Bb, R, C_rel), lambda b: (b, 0, 0)),
            ],
            out_specs=[
                pl.BlockSpec((Bb, Q, T), lambda b: (b, 0, 0)),
                pl.BlockSpec((Bb, R, 1), lambda b: (b, 0, 0)),
            ],
        ),
        compiler_params=pltpu.CompilerParams(
            dimension_semantics=("parallel",)),
    )(pred_nodes, tgt_t, pred_logits, pred_rels_score)

    # The tiled quadratic cost is rank-1: broadcast lazily in XLA (fuses into the
    # consumer) instead of writing E identical columns back to HBM.
    quad = jnp.broadcast_to(quad_col, (B, R, n_tgt_edges))
    return unary, quad


def _reference_costs(pred_nodes, pred_logits, pred_rels_score, tgt_nodes,
                     n_tgt_edges, cost_node_w, cost_class_w):
    out_nodes = pred_nodes[..., :3]
    diff = out_nodes[:, :, None, :] - tgt_nodes[:, None, :, :]
    dist = jnp.sqrt(jnp.sum(diff * diff, axis=-1))
    p1 = jax.nn.softmax(pred_logits, axis=-1)[..., 1:2]
    unary = cost_node_w * dist + cost_class_w * (-p1)
    q1 = jax.nn.softmax(pred_rels_score, axis=-1)[..., 1:2]
    quad = jnp.broadcast_to(-q1, q1.shape[:2] + (n_tgt_edges,))
    return unary, quad


if __name__ == "__main__":
    # Config constants (deterministic, in-script): lambda / solver params only
    # matter to the external QAP solver; cost weights used here.
    COST_NODE = 5.0
    COST_CLASS = 3.0

    B, Q, T, R, E, C = 2, 8, 8, 8, 8, 2   # batch, queries, tgt nodes, pred rels, tgt edges, classes

    key = jax.random.PRNGKey(0)
    k1, k2, k3, k4 = jax.random.split(key, 4)
    pred_nodes = jax.random.normal(k1, (B, Q, 4), dtype=jnp.float32)
    pred_logits = jax.random.normal(k2, (B, Q, C), dtype=jnp.float32)
    pred_rels_score = jax.random.normal(k3, (B, R, C), dtype=jnp.float32)
    tgt_nodes = jax.random.normal(k4, (B, T, 3), dtype=jnp.float32)

    unary, quad = graph_matcher_costs(
        pred_nodes, pred_logits, pred_rels_score, tgt_nodes, E, COST_NODE, COST_CLASS)
    jax.block_until_ready((unary, quad))

    ref_unary, ref_quad = _reference_costs(
        pred_nodes, pred_logits, pred_rels_score, tgt_nodes, E, COST_NODE, COST_CLASS)
    assert jnp.allclose(unary, ref_unary, atol=1e-4, rtol=1e-4), "unary mismatch"
    assert jnp.allclose(quad, ref_quad, atol=1e-5, rtol=1e-5), "quadratic mismatch"

    print("KERNEL_OK")
</pallas_src>

<mosaic_0001>
module attributes {stable_mosaic.version = 11 : i64} {
  func.func @_matcher_cost_kernel(%arg0: i32, %arg1: memref<1x8x4xf32, #tpu.memory_space<vmem>>, %arg2: memref<1x3x8xf32, #tpu.memory_space<vmem>>, %arg3: memref<1x8x2xf32, #tpu.memory_space<vmem>>, %arg4: memref<1x8x2xf32, #tpu.memory_space<vmem>>, %arg5: memref<1x8x8xf32, #tpu.memory_space<vmem>>, %arg6: memref<1x8x1xf32, #tpu.memory_space<vmem>>) attributes {dimension_semantics = [#tpu.dimension_semantics<parallel>], iteration_bounds = array<i64: 2>, scalar_prefetch = 0 : i64, scratch_operands = 0 : i64, tpu.core_type = #tpu.core_type<tc>, window_params = [{transform_indices = @transform_0, window_bounds = array<i64: 1, 8, 4>}, {transform_indices = @transform_1, window_bounds = array<i64: 1, 3, 8>}, {transform_indices = @transform_2, window_bounds = array<i64: 1, 8, 2>}, {transform_indices = @transform_3, window_bounds = array<i64: 1, 8, 2>}, {transform_indices = @transform_4, window_bounds = array<i64: 1, 8, 8>}, {transform_indices = @transform_5, window_bounds = array<i64: 1, 8, 1>}]} {
    %c0 = arith.constant 0 : index
    %c0_0 = arith.constant 0 : index
    %c0_1 = arith.constant 0 : index
    %0 = vector.load %arg1[%c0, %c0_0, %c0_1] : memref<1x8x4xf32, #tpu.memory_space<vmem>>, vector<1x8x4xf32>
    %c0_2 = arith.constant 0 : index
    %c0_3 = arith.constant 0 : index
    %c0_4 = arith.constant 0 : index
    %1 = vector.load %arg2[%c0_2, %c0_3, %c0_4] : memref<1x3x8xf32, #tpu.memory_space<vmem>>, vector<1x3x8xf32>
    %2 = vector.extract_strided_slice %0 {offsets = [0, 0, 0], sizes = [1, 8, 1], strides = [1, 1, 1]} : vector<1x8x4xf32> to vector<1x8x1xf32>
    %3 = vector.extract_strided_slice %1 {offsets = [0, 0, 0], sizes = [1, 1, 8], strides = [1, 1, 1]} : vector<1x3x8xf32> to vector<1x1x8xf32>
    %4 = vector.broadcast %2 : vector<1x8x1xf32> to vector<1x8x8xf32>
    %5 = vector.broadcast %3 : vector<1x1x8xf32> to vector<1x8x8xf32>
    %6 = arith.subf %4, %5 : vector<1x8x8xf32>
    %7 = arith.mulf %6, %6 : vector<1x8x8xf32>
    %8 = vector.extract_strided_slice %0 {offsets = [0, 0, 1], sizes = [1, 8, 1], strides = [1, 1, 1]} : vector<1x8x4xf32> to vector<1x8x1xf32>
    %9 = vector.extract_strided_slice %1 {offsets = [0, 1, 0], sizes = [1, 1, 8], strides = [1, 1, 1]} : vector<1x3x8xf32> to vector<1x1x8xf32>
    %10 = vector.broadcast %8 : vector<1x8x1xf32> to vector<1x8x8xf32>
    %11 = vector.broadcast %9 : vector<1x1x8xf32> to vector<1x8x8xf32>
    %12 = arith.subf %10, %11 : vector<1x8x8xf32>
    %13 = arith.mulf %12, %12 : vector<1x8x8xf32>
    %14 = arith.addf %7, %13 : vector<1x8x8xf32>
    %15 = vector.extract_strided_slice %0 {offsets = [0, 0, 2], sizes = [1, 8, 1], strides = [1, 1, 1]} : vector<1x8x4xf32> to vector<1x8x1xf32>
    %16 = vector.extract_strided_slice %1 {offsets = [0, 2, 0], sizes = [1, 1, 8], strides = [1, 1, 1]} : vector<1x3x8xf32> to vector<1x1x8xf32>
    %17 = vector.broadcast %15 : vector<1x8x1xf32> to vector<1x8x8xf32>
    %18 = vector.broadcast %16 : vector<1x1x8xf32> to vector<1x8x8xf32>
    %19 = arith.subf %17, %18 : vector<1x8x8xf32>
    %20 = arith.mulf %19, %19 : vector<1x8x8xf32>
    %21 = arith.addf %14, %20 : vector<1x8x8xf32>
    %22 = math.sqrt %21 : vector<1x8x8xf32>
    %c0_5 = arith.constant 0 : index
    %c0_6 = arith.constant 0 : index
    %c0_7 = arith.constant 0 : index
    %23 = vector.load %arg3[%c0_5, %c0_6, %c0_7] : memref<1x8x2xf32, #tpu.memory_space<vmem>>, vector<1x8x2xf32>
    %24 = vector.extract_strided_slice %23 {offsets = [0, 0, 0], sizes = [1, 8, 1], strides = [1, 1, 1]} : vector<1x8x2xf32> to vector<1x8x1xf32>
    %25 = vector.extract_strided_slice %23 {offsets = [0, 0, 1], sizes = [1, 8, 1], strides = [1, 1, 1]} : vector<1x8x2xf32> to vector<1x8x1xf32>
    %26 = arith.subf %24, %25 : vector<1x8x1xf32>
    %27 = math.exp %26 : vector<1x8x1xf32>
    %cst = arith.constant 1.000000e+00 : f32
    %28 = vector.broadcast %cst : f32 to vector<1x8x1xf32>
    %29 = arith.addf %28, %27 : vector<1x8x1xf32>
    %cst_8 = arith.constant 1.000000e+00 : f32
    %30 = vector.broadcast %cst_8 : f32 to vector<1x8x1xf32>
    %31 = arith.divf %30, %29 : vector<1x8x1xf32>
    %cst_9 = arith.constant 5.000000e+00 : f32
    %32 = vector.broadcast %cst_9 : f32 to vector<1x8x8xf32>
    %33 = arith.mulf %32, %22 : vector<1x8x8xf32>
    %cst_10 = arith.constant 3.000000e+00 : f32
    %34 = vector.broadcast %cst_10 : f32 to vector<1x8x1xf32>
    %35 = arith.mulf %34, %31 : vector<1x8x1xf32>
    %36 = vector.broadcast %35 : vector<1x8x1xf32> to vector<1x8x8xf32>
    %37 = arith.subf %33, %36 : vector<1x8x8xf32>
    %c0_11 = arith.constant 0 : index
    %c0_12 = arith.constant 0 : index
    %c0_13 = arith.constant 0 : index
    %38 = vector.load %arg5[%c0_11, %c0_12, %c0_13] : memref<1x8x8xf32, #tpu.memory_space<vmem>>, vector<1x8x8xf32>
    tpu.vector_store %arg5[%c0_11, %c0_12, %c0_13], %37 {strides = array<i32>} : memref<1x8x8xf32, #tpu.memory_space<vmem>>, vector<1x8x8xf32>,
    %c0_14 = arith.constant 0 : index
    %c0_15 = arith.constant 0 : index
    %c0_16 = arith.constant 0 : index
    %39 = vector.load %arg4[%c0_14, %c0_15, %c0_16] : memref<1x8x2xf32, #tpu.memory_space<vmem>>, vector<1x8x2xf32>
    %40 = vector.extract_strided_slice %39 {offsets = [0, 0, 0], sizes = [1, 8, 1], strides = [1, 1, 1]} : vector<1x8x2xf32> to vector<1x8x1xf32>
    %41 = vector.extract_strided_slice %39 {offsets = [0, 0, 1], sizes = [1, 8, 1], strides = [1, 1, 1]} : vector<1x8x2xf32> to vector<1x8x1xf32>
    %42 = arith.subf %40, %41 : vector<1x8x1xf32>
    %43 = math.exp %42 : vector<1x8x1xf32>
    %cst_17 = arith.constant 1.000000e+00 : f32
    %44 = vector.broadcast %cst_17 : f32 to vector<1x8x1xf32>
    %45 = arith.addf %44, %43 : vector<1x8x1xf32>
    %cst_18 = arith.constant 1.000000e+00 : f32
    %46 = vector.broadcast %cst_18 : f32 to vector<1x8x1xf32>
    %47 = arith.divf %46, %45 : vector<1x8x1xf32>
    %cst_19 = arith.constant 0.000000e+00 : f32
    %48 = vector.broadcast %cst_19 : f32 to vector<1x8x1xf32>
    %49 = arith.subf %48, %47 : vector<1x8x1xf32>
    %c0_20 = arith.constant 0 : index
    %c0_21 = arith.constant 0 : index
    %c0_22 = arith.constant 0 : index
    %50 = vector.load %arg6[%c0_20, %c0_21, %c0_22] : memref<1x8x1xf32, #tpu.memory_space<vmem>>, vector<1x8x1xf32>
    tpu.vector_store %arg6[%c0_20, %c0_21, %c0_22], %49 {strides = array<i32>} : memref<1x8x1xf32, #tpu.memory_space<vmem>>, vector<1x8x1xf32>,
    return
  }
  func.func @transform_0(%arg0: i32) -> (i32, i32, i32) {
    %c0_i32 = arith.constant 0 : i32
    %c0_i32_0 = arith.constant 0 : i32
    %c0_i32_1 = arith.constant 0 : i32
    return %arg0, %c0_i32, %c0_i32_0 : i32, i32, i32
  }
  func.func @transform_1(%arg0: i32) -> (i32, i32, i32) {
    %c0_i32 = arith.constant 0 : i32
    %c0_i32_0 = arith.constant 0 : i32
    %c0_i32_1 = arith.constant 0 : i32
    return %arg0, %c0_i32, %c0_i32_0 : i32, i32, i32
  }
  func.func @transform_2(%arg0: i32) -> (i32, i32, i32) {
    %c0_i32 = arith.constant 0 : i32
    %c0_i32_0 = arith.constant 0 : i32
    %c0_i32_1 = arith.constant 0 : i32
    return %arg0, %c0_i32, %c0_i32_0 : i32, i32, i32
  }
  func.func @transform_3(%arg0: i32) -> (i32, i32, i32) {
    %c0_i32 = arith.constant 0 : i32
    %c0_i32_0 = arith.constant 0 : i32
    %c0_i32_1 = arith.constant 0 : i32
    return %arg0, %c0_i32, %c0_i32_0 : i32, i32, i32
  }
  func.func @transform_4(%arg0: i32) -> (i32, i32, i32) {
    %c0_i32 = arith.constant 0 : i32
    %c0_i32_0 = arith.constant 0 : i32
    %c0_i32_1 = arith.constant 0 : i32
    return %arg0, %c0_i32, %c0_i32_0 : i32, i32, i32
  }
  func.func @transform_5(%arg0: i32) -> (i32, i32, i32) {
    %c0_i32 = arith.constant 0 : i32
    %c0_i32_0 = arith.constant 0 : i32
    %c0_i32_1 = arith.constant 0 : i32
    return %arg0, %c0_i32, %c0_i32_0 : i32, i32, i32
  }
}

</mosaic_0001>

<llo_original>
// kernel: tpu_custom_call.1
$region0: #{tpu_custom_call.1}
  #allocation0 [shape = 'u32[]', space=smem, size = 0x4, offset = 0x4, fixed_abs, tag = 'smem constant byte address 0x4 - core index']
  #allocation1 [shape = 'u32[144,128]{1,0:T(1,128)}', space=vmem, size = 0x12000, scoped, tag = 'internal scratch']
  %s0 = inlined_call_operand.vmem [shape: f32[2,8,4], index: 0, kind: input, shape index: {}]
  %s1 = inlined_call_operand.vmem [shape: f32[2,3,8], index: 1, kind: input, shape index: {}]
  %s2 = inlined_call_operand.vmem [shape: f32[2,8,2], index: 2, kind: input, shape index: {}]
  %s3 = inlined_call_operand.vmem [shape: f32[2,8,2], index: 3, kind: input, shape index: {}]
  %s4 = inlined_call_operand.hbm [shape: f32[2,8,8], index: 4, kind: output, shape index: {0}]
  %s5 = inlined_call_operand.vmem [shape: f32[2,8,1], index: 5, kind: output, shape index: {1}]
  %6 = xla_tuple %s4, %s5
  %s7 = sld [smem:[#allocation0]]
  $region57: #{tpu_custom_call.1} parent=0
    _
  %s9 = ssub.s32 1, %s7
  %s10 = scalar_select 0, %s9, %s7
  $region1: #{tpu_custom_call.1} parent=0
    #allocation2 [shape = 'u8[8192]{0}', space=vmem, size = 0x2000, scoped, tag = 'output window, operand 0']
    #allocation3 [shape = 's32[2]{0}', space=sflag, size = 0x8, scoped, tag = 'scoped memory for tpu_custom_call.1']
    %11 = vsyncpa [#allocation3], 0
    %s12 = scalar_lea.sflag [#allocation3], 1
    %13 = vsyncpa %s12, 0
    loop: start=0, step=1, limit=4
    $region2: #{tpu_custom_call.1} parent=1 // loop_pre_header
      _
    $region3: #{tpu_custom_call.1} parent=1 // loop_header
      %s15 = sphi 0, %s19
      %p16 = scmp.ge.s32.totalorder %s15, 4
      %s25 = sphi 0, %s27
      %s28 = sphi 0, %s25
      %s29 = sphi 0, %s28
      %s45 = sphi 0, %s29
      %s51 = sphi 0, %s53
      %s54 = sphi 0, %s51
      %s55 = sphi 0, %s54
      %s71 = sphi 0, %s55
      %s77 = sphi 0, %s79
      %s80 = sphi 0, %s77
      %s81 = sphi 0, %s80
      %s97 = sphi 0, %s81
      %s103 = sphi 0, %s105
      %s106 = sphi 0, %s103
      %s107 = sphi 0, %s106
      %s123 = sphi 0, %s107
      %s129 = sphi 0, %s131
      %s132 = sphi 0, %s129
      %s133 = sphi 0, %s132
      %s149 = sphi 0, %s133
      %s155 = sphi 0, %s157
      %s158 = sphi 0, %s155
      %s159 = sphi 0, %s158
      %s175 = sphi 0, %s159
    $region4: #{tpu_custom_call.1} parent=1 // loop_header_branch
      %18 = sbr.rel (%p16) target = $region8
    $region5: #{tpu_custom_call.1} parent=1 // loop_body
      %s20 = ssub.s32 %s15, 1
      %s21 = ssub.s32 %s15, 2
      %s22 = sadd.s32 %s15, 1
      %s23 = ssub.s32 %s15, %s22
      %p24 = scmp.eq.s32.totalorder %s23, 0
      %s26 = sadd.s32 %s25, 1
      %s27 = scalar_select %p24, %s25, %s26
      %p30 = pneg %p24
      %p31 = scmp.eq.s32.totalorder %s15, 1
      %p32 = por %p30, %p31
      %p33 = scmp.ne.s32.totalorder %s25, %s28
      %p34 = scmp.eq.s32.totalorder %s15, 0
      %p35 = por %p33, %p34
      %p36 = scmp.ne.s32.totalorder %s25, %s28
      %p37 = scmp.eq.s32.totalorder %s20, 1
      %p38 = por %p36, %p37
      %p39 = scmp.ne.s32.totalorder %s28, %s29
      %p40 = scmp.eq.s32.totalorder %s20, 0
      %p41 = por %p39, %p40
      %p42 = scmp.ne.s32.totalorder %s28, %s29
      %p43 = scmp.eq.s32.totalorder %s21, 1
      %p44 = por %p42, %p43
      %p46 = scmp.ne.s32.totalorder %s29, %s45
      %p47 = scmp.eq.s32.totalorder %s21, 0
      %p48 = por %p46, %p47
      %s49 = ssub.s32 %s15, %s22
      %p50 = scmp.eq.s32.totalorder %s49, 0
      %s52 = sadd.s32 %s51, 1
      %s53 = scalar_select %p50, %s51, %s52
      %p56 = pneg %p50
      %p57 = scmp.eq.s32.totalorder %s15, 1
      %p58 = por %p56, %p57
      %p59 = scmp.ne.s32.totalorder %s51, %s54
      %p60 = scmp.eq.s32.totalorder %s15, 0
      %p61 = por %p59, %p60
      %p62 = scmp.ne.s32.totalorder %s51, %s54
      %p63 = scmp.eq.s32.totalorder %s20, 1
      %p64 = por %p62, %p63
      %p65 = scmp.ne.s32.totalorder %s54, %s55
      %p66 = scmp.eq.s32.totalorder %s20, 0
      %p67 = por %p65, %p66
      %p68 = scmp.ne.s32.totalorder %s54, %s55
      %p69 = scmp.eq.s32.totalorder %s21, 1
      %p70 = por %p68, %p69
      %p72 = scmp.ne.s32.totalorder %s55, %s71
      %p73 = scmp.eq.s32.totalorder %s21, 0
      %p74 = por %p72, %p73
      %s75 = ssub.s32 %s15, %s22
      %p76 = scmp.eq.s32.totalorder %s75, 0
      %s78 = sadd.s32 %s77, 1
      %s79 = scalar_select %p76, %s77, %s78
      %p82 = pneg %p76
      %p83 = scmp.eq.s32.totalorder %s15, 1
      %p84 = por %p82, %p83
      %p85 = scmp.ne.s32.totalorder %s77, %s80
      %p86 = scmp.eq.s32.totalorder %s15, 0
      %p87 = por %p85, %p86
      %p88 = scmp.ne.s32.totalorder %s77, %s80
      %p89 = scmp.eq.s32.totalorder %s20, 1
      %p90 = por %p88, %p89
      %p91 = scmp.ne.s32.totalorder %s80, %s81
      %p92 = scmp.eq.s32.totalorder %s20, 0
      %p93 = por %p91, %p92
      %p94 = scmp.ne.s32.totalorder %s80, %s81
      %p95 = scmp.eq.s32.totalorder %s21, 1
      %p96 = por %p94, %p95
      %p98 = scmp.ne.s32.totalorder %s81, %s97
      %p99 = scmp.eq.s32.totalorder %s21, 0
      %p100 = por %p98, %p99
      %s101 = ssub.s32 %s15, %s22
      %p102 = scmp.eq.s32.totalorder %s101, 0
      %s104 = sadd.s32 %s103, 1
      %s105 = scalar_select %p102, %s103, %s104
      %p108 = pneg %p102
      %p109 = scmp.eq.s32.totalorder %s15, 1
      %p110 = por %p108, %p109
      %p111 = scmp.ne.s32.totalorder %s103, %s106
      %p112 = scmp.eq.s32.totalorder %s15, 0
      %p113 = por %p111, %p112
      %p114 = scmp.ne.s32.totalorder %s103, %s106
      %p115 = scmp.eq.s32.totalorder %s20, 1
      %p116 = por %p114, %p115
      %p117 = scmp.ne.s32.totalorder %s106, %s107
      %p118 = scmp.eq.s32.totalorder %s20, 0
      %p119 = por %p117, %p118
      %p120 = scmp.ne.s32.totalorder %s106, %s107
      %p121 = scmp.eq.s32.totalorder %s21, 1
      %p122 = por %p120, %p121
      %p124 = scmp.ne.s32.totalorder %s107, %s123
      %p125 = scmp.eq.s32.totalorder %s21, 0
      %p126 = por %p124, %p125
      %s127 = ssub.s32 %s15, %s22
      %p128 = scmp.eq.s32.totalorder %s127, 0
      %s130 = sadd.s32 %s129, 1
      %s131 = scalar_select %p128, %s129, %s130
      %p134 = pneg %p128
      %p135 = scmp.eq.s32.totalorder %s15, 1
      %p136 = por %p134, %p135
      %p137 = scmp.ne.s32.totalorder %s129, %s132
      %p138 = scmp.eq.s32.totalorder %s15, 0
      %p139 = por %p137, %p138
      %p140 = scmp.ne.s32.totalorder %s129, %s132
      %p141 = scmp.eq.s32.totalorder %s20, 1
      %p142 = por %p140, %p141
      %p143 = scmp.ne.s32.totalorder %s132, %s133
      %p144 = scmp.eq.s32.totalorder %s20, 0
      %p145 = por %p143, %p144
      %p146 = scmp.ne.s32.totalorder %s132, %s133
      %p147 = scmp.eq.s32.totalorder %s21, 1
      %p148 = por %p146, %p147
      %p150 = scmp.ne.s32.totalorder %s133, %s149
      %p151 = scmp.eq.s32.totalorder %s21, 0
      %p152 = por %p150, %p151
      %s153 = ssub.s32 %s15, %s22
      %p154 = scmp.eq.s32.totalorder %s153, 0
      %s156 = sadd.s32 %s155, 1
      %s157 = scalar_select %p154, %s155, %s156
      %p160 = pneg %p154
      %p161 = scmp.eq.s32.totalorder %s15, 1
      %p162 = por %p160, %p161
      %p163 = scmp.ne.s32.totalorder %s155, %s158
      %p164 = scmp.eq.s32.totalorder %s15, 0
      %p165 = por %p163, %p164
      %p166 = scmp.ne.s32.totalorder %s155, %s158
      %p167 = scmp.eq.s32.totalorder %s20, 1
      %p168 = por %p166, %p167
      %p169 = scmp.ne.s32.totalorder %s158, %s159
      %p170 = scmp.eq.s32.totalorder %s20, 0
      %p171 = por %p169, %p170
      %p172 = scmp.ne.s32.totalorder %s158, %s159
      %p173 = scmp.eq.s32.totalorder %s21, 1
      %p174 = por %p172, %p173
      %p176 = scmp.ne.s32.totalorder %s159, %s175
      %p177 = scmp.eq.s32.totalorder %s21, 0
      %p178 = por %p176, %p177
      %p179 = scmp.le.s32.totalorder 1, %s15
      %p180 = scmp.lt.s32.totalorder %s15, 3
      %p181 = pnand %p179, %p180
      %p182 = pneg %p181
      // Predicated region
      $region9: #{tpu_custom_call.1} parent=5 // pred_check
        _
      $region10: #{tpu_custom_call.1} parent=5 // pred_check_branch
        %184 = sbr.rel (%p181) target = $region12
      $region11: #{tpu_custom_call.1} parent=5 // pred_region
        %s185 = ssub.s32 %s15, 1
      $region12: #{tpu_custom_call.1} parent=5 // pred_fallthru
        _
      %p186 = scmp.lt.s32.totalorder %s15, 2
      // Predicated region
      $region13: #{tpu_custom_call.1} parent=5 // pred_check
        %p187 = pneg %p186
      $region14: #{tpu_custom_call.1} parent=5 // pred_check_branch
        %189 = sbr.rel (%p187) target = $region16
      $region15: #{tpu_custom_call.1} parent=5 // pred_region
        // Predicated region
        $region17: #{tpu_custom_call.1} parent=15 // pred_check
          %p190 = pneg %p35
        $region18: #{tpu_custom_call.1} parent=15 // pred_check_branch
          %192 = sbr.rel (%p190) target = $region20
        $region19: #{tpu_custom_call.1} parent=15 // pred_region
          %p193 = scmp.lt.s32.totalorder %s15, 1
          %s194 = scalar_select %p193, %s15, 1
          %s195 = smul.addr %s194, 8
          %s196 = scalar_lea.vmem %s0, %s195
        $region20: #{tpu_custom_call.1} parent=15 // pred_fallthru
          _
        // Predicated region
        $region21: #{tpu_custom_call.1} parent=15 // pred_check
          %p197 = pneg %p61
        $region22: #{tpu_custom_call.1} parent=15 // pred_check_branch
          %199 = sbr.rel (%p197) target = $region24
        $region23: #{tpu_custom_call.1} parent=15 // pred_region
          %p200 = scmp.lt.s32.totalorder %s15, 1
          %s201 = scalar_select %p200, %s15, 1
          %s202 = smul.addr %s201, 4
          %s203 = scalar_lea.vmem %s1, %s202
        $region24: #{tpu_custom_call.1} parent=15 // pred_fallthru
          _
        // Predicated region
        $region25: #{tpu_custom_call.1} parent=15 // pred_check
          %p204 = pneg %p87
        $region26: #{tpu_custom_call.1} parent=15 // pred_check_branch
          %206 = sbr.rel (%p204) target = $region28
        $region27: #{tpu_custom_call.1} parent=15 // pred_region
          %p207 = scmp.lt.s32.totalorder %s15, 1
          %s208 = scalar_select %p207, %s15, 1
          %s209 = smul.addr %s208, 8
          %s210 = scalar_lea.vmem %s2, %s209
        $region28: #{tpu_custom_call.1} parent=15 // pred_fallthru
          _
        // Predicated region
        $region29: #{tpu_custom_call.1} parent=15 // pred_check
          %p211 = pneg %p113
        $region30: #{tpu_custom_call.1} parent=15 // pred_check_branch
          %213 = sbr.rel (%p211) target = $region32
        $region31: #{tpu_custom_call.1} parent=15 // pred_region
          %p214 = scmp.lt.s32.totalorder %s15, 1
          %s215 = scalar_select %p214, %s15, 1
          %s216 = smul.addr %s215, 8
          %s217 = scalar_lea.vmem %s3, %s216
        $region32: #{tpu_custom_call.1} parent=15 // pred_fallthru
          _
      $region16: #{tpu_custom_call.1} parent=5 // pred_fallthru
        _
      %p218 = scmp.le.s32.totalorder 1, %s15
      %p219 = scmp.lt.s32.totalorder %s15, 3
      %p220 = pnand %p218, %p219
      %p221 = pneg %p220
      // Predicated region
      $region33: #{tpu_custom_call.1} parent=5 // pred_check
        _
      $region34: #{tpu_custom_call.1} parent=5 // pred_check_branch
        %223 = sbr.rel (%p220) target = $region36
      $region35: #{tpu_custom_call.1} parent=5 // pred_region
        %s224 = ssub.s32 %s15, 1
        %p225 = scmp.lt.s32.totalorder %s20, 1
        %s226 = scalar_select %p225, %s20, 1
        %s227 = smul.addr %s226, 8
        %s228 = scalar_lea.vmem %s0, %s227
        %p229 = pneg %p41
        %p230 = pneg %p38
        %p231 = scmp.lt.s32.totalorder %s20, 1
        %s232 = scalar_select %p231, %s20, 1
        %s233 = smul.addr %s232, 4
        %s234 = scalar_lea.vmem %s1, %s233
        %p235 = pneg %p67
        %p236 = pneg %p64
        %p237 = scmp.lt.s32.totalorder %s20, 1
        %s238 = scalar_select %p237, %s20, 1
        %s239 = smul.addr %s238, 8
        %s240 = scalar_lea.vmem %s2, %s239
        %p241 = pneg %p93
        %p242 = pneg %p90
        %p243 = scmp.lt.s32.totalorder %s20, 1
        %s244 = scalar_select %p243, %s20, 1
        %s245 = smul.addr %s244, 8
        %s246 = scalar_lea.vmem %s3, %s245
        %p247 = pneg %p119
        %p248 = pneg %p116
        %p249 = pneg %p145
        %p250 = pneg %p142
        %s251 = sand.u32 %s132, 1
        %s252 = scalar_lea.sflag [#allocation3], %s251
        %s253 = sand.u32 %s132, 1
        %s254 = smul.addr %s253, 8
        %s255 = scalar_lea.vmem [#allocation2], %s254
        %p256 = pneg %p171
        %p257 = pneg %p168
        %p258 = scmp.lt.s32.totalorder %s20, 1
        %s259 = scalar_select %p258, %s20, 1
        %s260 = smul.addr %s259, 8
        %s261 = scalar_lea.vmem %s5, %s260
        %p262 = scmp.lt.s32.totalorder %s20, 1
        %s263 = scalar_select %p262, %s20, 1
        %s264 = smul.addr %s263, 8
        %s265 = scalar_lea.vmem %s0, %s264
        %p266 = scmp.lt.s32.totalorder %s20, 1
        %s267 = scalar_select %p266, %s20, 1
        %s268 = smul.addr %s267, 4
        %s269 = scalar_lea.vmem %s1, %s268
        %p270 = scmp.lt.s32.totalorder %s20, 1
        %s271 = scalar_select %p270, %s20, 1
        %s272 = smul.addr %s271, 8
        %s273 = scalar_lea.vmem %s2, %s272
        %p274 = scmp.lt.s32.totalorder %s20, 1
        %s275 = scalar_select %p274, %s20, 1
        %s276 = smul.addr %s275, 8
        %s277 = scalar_lea.vmem %s3, %s276
        %p278 = scmp.lt.s32.totalorder %s20, 1
        %s279 = scalar_select %p278, %s20, 1
        %s280 = smul.addr %s279, 8
        %s281 = scalar_lea.vmem %s5, %s280
        %v282 = vld [vmem:[%s265] sm:$0xff]
        %v283 = vld [vmem:[%s269] sm:$0x7]
        %285 = vset.pattern.permute.xlu0 0
        %286 = vperm.xlu0 %285, %v282
        %v287 = vpop.permute.xlu0 %286
        %v289 = vlaneseq
        %v290 = vshrl.u32 %v289, 7
        %v291 = vsub.s32 0, %v290
        %v292 = vrot.slane %v283, %v291
        %v293 = vsub.f32 %v287, %v292
        %v294 = vmul.f32 %v293, %v293
        %295 = vset.pattern.permute.xlu0 1
        %296 = vperm.xlu0 %295, %v282
        %v297 = vpop.permute.xlu0 %296
        %v299 = vlaneseq
        %v300 = vshrl.u32 %v299, 7
        %v301 = vsub.s32 1, %v300
        %v302 = vrot.slane %v283, %v301
        %v303 = vsub.f32 %v297, %v302
        %v304 = vmul.f32 %v303, %v303
        %v305 = vadd.f32 %v294, %v304
        %306 = vset.pattern.permute.xlu0 2
        %307 = vperm.xlu0 %306, %v282
        %v308 = vpop.permute.xlu0 %307
        %v310 = vlaneseq
        %v311 = vshrl.u32 %v310, 7
        %v312 = vsub.s32 2, %v311
        %v313 = vrot.slane %v283, %v312
        %v314 = vsub.f32 %v308, %v313
        %v315 = vmul.f32 %v314, %v314
        %v316 = vadd.f32 %v305, %v315
        %v317 = vrsqrt.pop %v316
        %v318 = vmul.f32 %v316, %v317
        %vm319 = vcmp.eq.f32.partialorder %v316, inf
        %v320 = vsel %vm319, %v316, %v318
        %vm321 = vcmp.eq.f32.partialorder %v316, 0.0
        %v322 = vand.u32 %v316, 2147483648
        %v323 = vsel %vm321, %v322, %v320
        %v324 = vld [vmem:[%s273] sm:$0xff]
        %326 = vrot.lane.b32.xlu0 %v324, 127
        %v327 = vpop.permute.xlu0 %326
        %v329 = vsub.f32 %v324, %v327
        %v330 = vmul.f32 %v329, 1.442695
        %v331 = vpow.pop %v330
        %v332 = vadd.f32 %v331, 1.0
        %v333 = vrcp.pop %v332
        %v334 = vmul.f32 1.0, %v333
        %v335 = vmul.f32 %v323, 5.0
        %v336 = vmul.f32 %v334, 3.0
        %338 = vset.pattern.permute.xlu0 0
        %339 = vperm.xlu0 %338, %v336
        %v340 = vpop.permute.xlu0 %339
        %v342 = vsub.f32 %v335, %v340
        %vm343 = vcmask 64512
        %344 = vst.msk [vmem:[%s255] sm:$0xff] %vm343, %v342
        %v345 = vld [vmem:[%s277] sm:$0xff]
        %347 = vrot.lane.b32.xlu0 %v345, 127
        %v348 = vpop.permute.xlu0 %347
        %v350 = vsub.f32 %v345, %v348
        %v351 = vmul.f32 %v350, 1.442695
        %v352 = vpow.pop %v351
        %v353 = vadd.f32 %v352, 1.0
        %v354 = vrcp.pop %v353
        %v355 = vmul.f32 1.0, %v354
        %v356 = vsub.f32 0.0, %v355
        %vm357 = vcmask 7168
        %358 = vst.msk [vmem:[%s281] sm:$0xff] %vm357, %v356
        %s359 = sand.u32 %s132, 1
        %s360 = scalar_lea.sflag [#allocation3], %s359
        %s361 = sand.u32 %s132, 1
        %s362 = smul.addr %s361, 8
        %s363 = scalar_lea.vmem [#allocation2], %s362
        %p364 = scmp.lt.s32.totalorder %s20, 1
        %s365 = scalar_select %p364, %s20, 1
        %s366 = smul.addr %s365, 8
        %s367 = scalar_lea.vmem %s5, %s366
        // Predicated region
        $region37: #{tpu_custom_call.1} parent=35 // pred_check
          %p368 = pneg %p142
        $region38: #{tpu_custom_call.1} parent=35 // pred_check_branch
          %370 = sbr.rel (%p368) target = $region40
        $region39: #{tpu_custom_call.1} parent=35 // pred_region
          %s372 = ssub.s32 128, 128
          %373 = vsyncadd %s360, %s372
          %s374 = smul.addr %s20, 128
          %s375 = scalar_lea.hbm %s4, %s374
          %s377 = sshll.u32 %s363, 4
          %s378 = int_to_ptr.vmem [resolvable:$true] %s377
          %380 = dma.vmem_to_hbm [thread:$0]  %s378, 128, %s375, %s360
        $region40: #{tpu_custom_call.1} parent=35 // pred_fallthru
          _
        // Predicated region
        $region41: #{tpu_custom_call.1} parent=35 // pred_check
          %p381 = pneg %p168
        $region42: #{tpu_custom_call.1} parent=35 // pred_check_branch
          %383 = sbr.rel (%p381) target = $region44
        $region43: #{tpu_custom_call.1} parent=35 // pred_region
          _
        $region44: #{tpu_custom_call.1} parent=35 // pred_fallthru
          _
      $region36: #{tpu_custom_call.1} parent=5 // pred_fallthru
        _
      %p384 = scmp.le.s32.totalorder 2, %s15
      // Predicated region
      $region45: #{tpu_custom_call.1} parent=5 // pred_check
        %p385 = pneg %p384
      $region46: #{tpu_custom_call.1} parent=5 // pred_check_branch
        %387 = sbr.rel (%p385) target = $region48
      $region47: #{tpu_custom_call.1} parent=5 // pred_region
        %s388 = ssub.s32 %s15, 2
        // Predicated region
        $region49: #{tpu_custom_call.1} parent=47 // pred_check
          %p389 = pneg %p148
        $region50: #{tpu_custom_call.1} parent=47 // pred_check_branch
          %391 = sbr.rel (%p389) target = $region52
        $region51: #{tpu_custom_call.1} parent=47 // pred_region
          %s392 = sand.u32 %s133, 1
          %s393 = scalar_lea.sflag [#allocation3], %s392
          %s394 = sand.u32 %s133, 1
          %s395 = smul.addr %s394, 8
          %s396 = scalar_lea.vmem [#allocation2], %s395
          %397 = dma.done %s393, 128
        $region52: #{tpu_custom_call.1} parent=47 // pred_fallthru
          _
        // Predicated region
        $region53: #{tpu_custom_call.1} parent=47 // pred_check
          %p398 = pneg %p174
        $region54: #{tpu_custom_call.1} parent=47 // pred_check_branch
          %400 = sbr.rel (%p398) target = $region56
        $region55: #{tpu_custom_call.1} parent=47 // pred_region
          %p401 = scmp.lt.s32.totalorder %s21, 1
          %s402 = scalar_select %p401, %s21, 1
          %s403 = smul.addr %s402, 8
          %s404 = scalar_lea.vmem %s5, %s403
        $region56: #{tpu_custom_call.1} parent=47 // pred_fallthru
          _
      $region48: #{tpu_custom_call.1} parent=5 // pred_fallthru
        _
    $region6: #{tpu_custom_call.1} parent=1 // loop_footer
      %s19 = sadd.s32 1, %s15
    $region7: #{tpu_custom_call.1} parent=1 // loop_footer_branch
      %14 = sbr.rel target = $region3
    $region8: #{tpu_custom_call.1} parent=1 // loop_exit
      _
    %405 = vsyncpa [#allocation3], 1
    %s406 = scalar_lea.sflag [#allocation3], 1
    %407 = vsyncpa %s406, 1

</llo_original>
